<compile_context>
chip_gen: v5e
topology: v5e:2x2
jax: 0.10.0
libtpu: 0.0.40
codegen_flags: <defaults>
</compile_context>

<pallas_src>
import functools

import jax
import jax.numpy as jnp
from jax.experimental import pallas as pl
from jax.experimental.pallas import tpu as pltpu


# ----------------------------------------------------------------------------
# Fused Pallas kernel (backbone stand-in + segment mean + classifier_fc)
# ----------------------------------------------------------------------------
def fused_kernel(x_ref, wb_ref, bb_ref, wfc_ref, bfc_ref, out_ref, *, B, S, HW):
    """Whole-array VMEM refs (no grid):

    x_ref   : (N, C*HW) f32   N = B * course_segment, per-row flattened (C,H,W)
    wb_ref  : (C, F)    f32   backbone stand-in weight (NOT expanded over HW)
    bb_ref  : (1, F)    f32   backbone bias
    wfc_ref : (F, Kp)   bf16  classifier_fc weight, lane-padded to Kp=128
    bfc_ref : (1, Kp)   f32   classifier_fc bias, lane-padded
    out_ref : (Bp, Kp)  f32   padded logits (full (8,128) vreg tile store)
    """
    N = x_ref.shape[0]
    C, F = wb_ref.shape
    Bp, Kp = out_ref.shape

    # --- backbone stand-in: GAP (lane reduce) + tiny C-term contraction on the
    #     VPU (a K=3 MXU matmul would waste >90% of the array) + bias + ReLU.
    feat = jnp.broadcast_to(bb_ref[...], (N, F))            # hoisted broadcast, f32
    for c in range(C):                                      # C == 3, static unroll
        xc = x_ref[:, c * HW:(c + 1) * HW]                  # (N, HW) aligned lane slice
        gap_c = jnp.mean(xc, axis=-1, keepdims=True)        # (N, 1)
        feat = feat + gap_c * wb_ref[c:c + 1, :]            # (N,1)*(1,F) broadcast
    feat = jnp.maximum(feat, 0.0)                           # (N, F)

    # --- segment mean: contiguous sublane groups per batch row (no avg matmul),
    #     then zero-pad rows up to Bp so the matmul/store is a full (8, ·) tile.
    rows = [jnp.mean(feat[b * S:(b + 1) * S, :], axis=0, keepdims=True)
            for b in range(B)]
    if Bp > B:
        rows.append(jnp.zeros((Bp - B, F), jnp.float32))
    course_p = jnp.concatenate(rows, axis=0)                # (Bp, F)

    # --- classifier_fc: the one real MXU matmul; bf16 operands, f32 accumulate.
    logits = jnp.dot(course_p.astype(jnp.bfloat16), wfc_ref[...],
                     preferred_element_type=jnp.float32) + bfc_ref[...]
    out_ref[...] = logits                                   # unmasked (Bp, Kp) store


# ----------------------------------------------------------------------------
# Init-time parameter folding + jitted per-call forward
# ----------------------------------------------------------------------------
def make_binary_classifier_forward(params, num_class, course_segment,
                                   new_length=1, modality="RGB"):
    """Folds/pads parameters ONCE and returns a jitted train_forward mirror."""
    sample_len = (3 if modality == "RGB" else 2) * new_length      # C
    C, F = params["w_base"].shape
    assert C == sample_len
    K = num_class
    Kp = max(128, ((K + 127) // 128) * 128)                        # lane-dense cols
    S = course_segment

    # Device-resident folded params (constants w.r.t. the data).
    w_base = params["w_base"].astype(jnp.float32)                  # (C, F)
    b_base = params["b_base"].reshape(1, F).astype(jnp.float32)    # (1, F)
    w_fc_p = jnp.zeros((F, Kp), jnp.bfloat16).at[:, :K].set(
        params["w_fc"].astype(jnp.bfloat16))                       # (F, Kp) bf16
    b_fc_p = jnp.zeros((1, Kp), jnp.float32).at[:, :K].set(
        params["b_fc"].reshape(1, K).astype(jnp.float32))          # (1, Kp)

    @jax.jit
    def forward(inputdata, target):
        B = inputdata.shape[0]
        H, W = inputdata.shape[-2], inputdata.shape[-1]
        HW = H * W
        N = B * S
        Bp = ((B + 7) // 8) * 8                                    # sublane-dense rows

        # inputdata.view((-1, sample_len) + size[-2:]) then flatten (C,H,W) per row.
        x_flat = inputdata.reshape(N, C * HW)                      # (N, C*HW)

        out_p = pl.pallas_call(
            functools.partial(fused_kernel, B=B, S=S, HW=HW),
            out_shape=jax.ShapeDtypeStruct((Bp, Kp), jnp.float32),
            # No grid: single invocation, whole arrays resident in VMEM
            # (no double-buffered pipeline for a one-step launch).
            in_specs=[pl.BlockSpec(memory_space=pltpu.MemorySpace.VMEM)] * 5,
            out_specs=pl.BlockSpec(memory_space=pltpu.MemorySpace.VMEM),
        )(x_flat, w_base, b_base, w_fc_p, b_fc_p)

        raw_course_ft = out_p[:B, :K]                              # (B, num_class)
        return raw_course_ft, target.reshape(-1)

    return forward


# ----------------------------------------------------------------------------
# Main
# ----------------------------------------------------------------------------
if __name__ == "__main__":
    # Small shapes consistent with the module
    num_class = 2
    course_segment = 4
    new_length = 1
    sample_len = 3 * new_length
    B, H, W = 2, 16, 16
    feature_dim = 128                      # (2048 for real resnet101; scaled down)

    key = jax.random.PRNGKey(0)
    k_x, k_t, k_wb, k_wfc = jax.random.split(key, 4)

    # Input: (B, course_segment * sample_len, H, W), target: (B, 1)
    x = jax.random.normal(k_x, (B, course_segment * sample_len, H, W),
                          dtype=jnp.float32)
    target = jax.random.randint(k_t, (B, 1), 0, num_class, dtype=jnp.int32)

    params = {
        # stand-in backbone params (deterministic)
        "w_base": jax.random.normal(k_wb, (sample_len, feature_dim),
                                    dtype=jnp.float32) * 0.1,
        "b_base": jnp.zeros((1, feature_dim), dtype=jnp.float32),
        # classifier_fc: nn.init.normal(std=0.001), bias = 0
        "w_fc": (jax.random.normal(k_wfc, (feature_dim, num_class),
                                   dtype=jnp.float32) * 0.001),
        "b_fc": jnp.zeros((1, num_class), dtype=jnp.float32),
    }

    # Fold params once, jit the per-call forward.
    forward = make_binary_classifier_forward(params, num_class, course_segment,
                                             new_length=new_length, modality="RGB")

    raw_course_ft, tgt = forward(x, target)
    jax.block_until_ready(raw_course_ft)
    jax.block_until_ready(tgt)

    assert raw_course_ft.shape == (B, num_class)
    assert tgt.shape == (B,)

    # Cross-check against a pure-JAX reference of the same math (unfused form)
    N = B * course_segment
    gap = jnp.mean(x.reshape(N, sample_len, H * W), axis=-1)       # (N, C)
    feat_ref = jnp.maximum(gap @ params["w_base"] + params["b_base"], 0.0)
    course_ref = feat_ref.reshape(B, course_segment, feature_dim).mean(axis=1)
    logits_ref = course_ref @ params["w_fc"] + params["b_fc"]
    assert jnp.allclose(raw_course_ft, logits_ref, atol=1e-4, rtol=1e-4)

    print("KERNEL_OK")
</pallas_src>

<mosaic_0001>
module attributes {stable_mosaic.version = 11 : i64} {
  func.func @fused_kernel(%arg0: memref<8x768xf32, #tpu.memory_space<vmem>>, %arg1: memref<3x128xf32, #tpu.memory_space<vmem>>, %arg2: memref<1x128xf32, #tpu.memory_space<vmem>>, %arg3: memref<128x128xbf16, #tpu.memory_space<vmem>>, %arg4: memref<1x128xf32, #tpu.memory_space<vmem>>, %arg5: memref<8x128xf32, #tpu.memory_space<vmem>>) attributes {dimension_semantics = [], scalar_prefetch = 0 : i64, scratch_operands = 0 : i64, tpu.core_type = #tpu.core_type<tc>} {
    %c0 = arith.constant 0 : index
    %c0_0 = arith.constant 0 : index
    %0 = vector.load %arg2[%c0, %c0_0] : memref<1x128xf32, #tpu.memory_space<vmem>>, vector<1x128xf32>
    %1 = vector.shape_cast %0 : vector<1x128xf32> to vector<1x128xf32>
    %2 = vector.broadcast %1 : vector<1x128xf32> to vector<8x128xf32>
    %c0_1 = arith.constant 0 : index
    %c0_2 = arith.constant 0 : index
    %3 = vector.load %arg0[%c0_1, %c0_2] : memref<8x768xf32, #tpu.memory_space<vmem>>, vector<8x256xf32>
    %cst = arith.constant dense<0.000000e+00> : vector<8xf32>
    %4 = vector.multi_reduction <add>, %3, %cst [1] : vector<8x256xf32> to vector<8xf32>
    %5 = vector.shape_cast %4 : vector<8xf32> to vector<8x1xf32>
    %cst_3 = arith.constant 2.560000e+02 : f32
    %6 = vector.broadcast %cst_3 : f32 to vector<8x1xf32>
    %7 = arith.divf %5, %6 : vector<8x1xf32>
    %c0_4 = arith.constant 0 : index
    %c0_5 = arith.constant 0 : index
    %8 = vector.load %arg1[%c0_4, %c0_5] : memref<3x128xf32, #tpu.memory_space<vmem>>, vector<1x128xf32>
    %9 = vector.broadcast %7 : vector<8x1xf32> to vector<8x128xf32>
    %10 = vector.broadcast %8 : vector<1x128xf32> to vector<8x128xf32>
    %11 = arith.mulf %9, %10 : vector<8x128xf32>
    %12 = arith.addf %2, %11 : vector<8x128xf32>
    %c0_6 = arith.constant 0 : index
    %c256 = arith.constant 256 : index
    %13 = vector.load %arg0[%c0_6, %c256] : memref<8x768xf32, #tpu.memory_space<vmem>>, vector<8x256xf32>
    %cst_7 = arith.constant dense<0.000000e+00> : vector<8xf32>
    %14 = vector.multi_reduction <add>, %13, %cst_7 [1] : vector<8x256xf32> to vector<8xf32>
    %15 = vector.shape_cast %14 : vector<8xf32> to vector<8x1xf32>
    %cst_8 = arith.constant 2.560000e+02 : f32
    %16 = vector.broadcast %cst_8 : f32 to vector<8x1xf32>
    %17 = arith.divf %15, %16 : vector<8x1xf32>
    %c1 = arith.constant 1 : index
    %c0_9 = arith.constant 0 : index
    %18 = vector.load %arg1[%c1, %c0_9] : memref<3x128xf32, #tpu.memory_space<vmem>>, vector<1x128xf32>
    %19 = vector.broadcast %17 : vector<8x1xf32> to vector<8x128xf32>
    %20 = vector.broadcast %18 : vector<1x128xf32> to vector<8x128xf32>
    %21 = arith.mulf %19, %20 : vector<8x128xf32>
    %22 = arith.addf %12, %21 : vector<8x128xf32>
    %c0_10 = arith.constant 0 : index
    %c512 = arith.constant 512 : index
    %23 = vector.load %arg0[%c0_10, %c512] : memref<8x768xf32, #tpu.memory_space<vmem>>, vector<8x256xf32>
    %cst_11 = arith.constant dense<0.000000e+00> : vector<8xf32>
    %24 = vector.multi_reduction <add>, %23, %cst_11 [1] : vector<8x256xf32> to vector<8xf32>
    %25 = vector.shape_cast %24 : vector<8xf32> to vector<8x1xf32>
    %cst_12 = arith.constant 2.560000e+02 : f32
    %26 = vector.broadcast %cst_12 : f32 to vector<8x1xf32>
    %27 = arith.divf %25, %26 : vector<8x1xf32>
    %c2 = arith.constant 2 : index
    %c0_13 = arith.constant 0 : index
    %28 = vector.load %arg1[%c2, %c0_13] : memref<3x128xf32, #tpu.memory_space<vmem>>, vector<1x128xf32>
    %29 = vector.broadcast %27 : vector<8x1xf32> to vector<8x128xf32>
    %30 = vector.broadcast %28 : vector<1x128xf32> to vector<8x128xf32>
    %31 = arith.mulf %29, %30 : vector<8x128xf32>
    %32 = arith.addf %22, %31 : vector<8x128xf32>
    %cst_14 = arith.constant 0.000000e+00 : f32
    %33 = vector.broadcast %cst_14 : f32 to vector<8x128xf32>
    %34 = arith.maximumf %32, %33 : vector<8x128xf32>
    %35 = vector.extract_strided_slice %34 {offsets = [0, 0], sizes = [4, 128], strides = [1, 1]} : vector<8x128xf32> to vector<4x128xf32>
    %cst_15 = arith.constant dense<0.000000e+00> : vector<128xf32>
    %36 = vector.multi_reduction <add>, %35, %cst_15 [0] : vector<4x128xf32> to vector<128xf32>
    %37 = vector.shape_cast %36 : vector<128xf32> to vector<1x128xf32>
    %cst_16 = arith.constant 4.000000e+00 : f32
    %38 = vector.broadcast %cst_16 : f32 to vector<1x128xf32>
    %39 = arith.divf %37, %38 : vector<1x128xf32>
    %40 = vector.extract_strided_slice %34 {offsets = [4, 0], sizes = [4, 128], strides = [1, 1]} : vector<8x128xf32> to vector<4x128xf32>
    %cst_17 = arith.constant dense<0.000000e+00> : vector<128xf32>
    %41 = vector.multi_reduction <add>, %40, %cst_17 [0] : vector<4x128xf32> to vector<128xf32>
    %42 = vector.shape_cast %41 : vector<128xf32> to vector<1x128xf32>
    %cst_18 = arith.constant 4.000000e+00 : f32
    %43 = vector.broadcast %cst_18 : f32 to vector<1x128xf32>
    %44 = arith.divf %42, %43 : vector<1x128xf32>
    %cst_19 = arith.constant 0.000000e+00 : f32
    %45 = vector.broadcast %cst_19 : f32 to vector<6x128xf32>
    %46 = tpu.concatenate %39, %44, %45 in 0 : vector<1x128xf32>, vector<1x128xf32>, vector<6x128xf32> -> vector<8x128xf32>
    %47 = arith.truncf %46 : vector<8x128xf32> to vector<8x128xbf16>
    %c0_20 = arith.constant 0 : index
    %c0_21 = arith.constant 0 : index
    %48 = vector.load %arg3[%c0_20, %c0_21] : memref<128x128xbf16, #tpu.memory_space<vmem>>, vector<128x128xbf16>
    %cst_22 = arith.constant dense<0.000000e+00> : vector<8x128xf32>
    %49 = tpu.matmul %47, %48, %cst_22 {dimension_numbers = #tpu.dot_dimension_numbers<[1], [0], [0], [1], [0, 0, 1, 1], [], []>} : vector<8x128xbf16>, vector<128x128xbf16>, vector<8x128xf32> -> vector<8x128xf32>
    %c0_23 = arith.constant 0 : index
    %c0_24 = arith.constant 0 : index
    %50 = vector.load %arg4[%c0_23, %c0_24] : memref<1x128xf32, #tpu.memory_space<vmem>>, vector<1x128xf32>
    %51 = vector.broadcast %50 : vector<1x128xf32> to vector<8x128xf32>
    %52 = arith.addf %49, %51 : vector<8x128xf32>
    %c0_25 = arith.constant 0 : index
    %c0_26 = arith.constant 0 : index
    %53 = vector.load %arg5[%c0_25, %c0_26] : memref<8x128xf32, #tpu.memory_space<vmem>>, vector<8x128xf32>
    tpu.vector_store %arg5[%c0_25, %c0_26], %52 {strides = array<i32>} : memref<8x128xf32, #tpu.memory_space<vmem>>, vector<8x128xf32>,
    return
  }
}

</mosaic_0001>

<llo_original>
// kernel: forward.1
$region0: #{forward.1}
  #allocation0 [shape = 'u32[]', space=smem, size = 0x4, offset = 0x4, fixed_abs, tag = 'smem constant byte address 0x4 - core index']
  #allocation1 [shape = 'u32[72,128]{1,0:T(1,128)}', space=vmem, size = 0x9000, scoped, tag = 'internal scratch']
  %s0 = inlined_call_operand.vmem [shape: f32[8,768], index: 0, kind: input, shape index: {}]
  %s1 = inlined_call_operand.vmem [shape: f32[3,128], index: 1, kind: input, shape index: {}]
  %s2 = inlined_call_operand.vmem [shape: f32[1,128], index: 2, kind: input, shape index: {}, may-alias: {2,4}]
  %s3 = inlined_call_operand.vmem [shape: bf16[128,128], index: 3, kind: input, shape index: {}]
  %s4 = inlined_call_operand.vmem [shape: f32[1,128], index: 4, kind: input, shape index: {}, may-alias: {2,4}]
  %s5 = inlined_call_operand.vmem [shape: f32[8,128], index: 5, kind: output, shape index: {}]
  %s6 = sld [smem:[#allocation0]]
  $region30: #{forward.1} parent=0
    _
  %s8 = ssub.s32 1, %s6
  %s9 = scalar_select 0, %s8, %s6
  // Predicated region
  $region2: #{forward.1} parent=0 // pred_check
    _
  $region3: #{forward.1} parent=0 // pred_check_branch
    %11 = sbr.rel (0) target = $region5
  $region4: #{forward.1} parent=0 // pred_region
    _
  $region5: #{forward.1} parent=0 // pred_fallthru
    _
  // Predicated region
  $region6: #{forward.1} parent=0 // pred_check
    _
  $region7: #{forward.1} parent=0 // pred_check_branch
    %13 = sbr.rel (0) target = $region9
  $region8: #{forward.1} parent=0 // pred_region
    _
  $region9: #{forward.1} parent=0 // pred_fallthru
    _
  // Predicated region
  $region10: #{forward.1} parent=0 // pred_check
    _
  $region11: #{forward.1} parent=0 // pred_check_branch
    %15 = sbr.rel (0) target = $region13
  $region12: #{forward.1} parent=0 // pred_region
    _
  $region13: #{forward.1} parent=0 // pred_fallthru
    _
  // Predicated region
  $region14: #{forward.1} parent=0 // pred_check
    _
  $region15: #{forward.1} parent=0 // pred_check_branch
    %17 = sbr.rel (0) target = $region17
  $region16: #{forward.1} parent=0 // pred_region
    _
  $region17: #{forward.1} parent=0 // pred_fallthru
    _
  // Predicated region
  $region18: #{forward.1} parent=0 // pred_check
    _
  $region19: #{forward.1} parent=0 // pred_check_branch
    %19 = sbr.rel (0) target = $region21
  $region20: #{forward.1} parent=0 // pred_region
    _
  $region21: #{forward.1} parent=0 // pred_fallthru
    _
  %v20 = vld [vmem:[%s2] sm:$0x1]
  %v22 = vperm.slane %v20, 0
  %v24 = vld [vmem:[%s0] sm:$0xff]
  %v25 = vld [vmem:[%s0 + $0x8] sm:$0xff]
  %v26 = vadd.f32 %v24, %v25
  %27 = vadd.xlane.f32.xlu0 %v26
  %v28 = vpop.xlane.xlu0 %27
  %v29 = vrcp.pop 256.0
  %v30 = vmul.f32 256.0, %v29
  %v31 = vsub.f32 1.0, %v30
  %v32 = vmul.f32 %v29, %v31
  %v33 = vadd.f32 %v29, %v32
  %vm34 = vweird.f32 %v29
  %v35 = vsel %vm34, %v29, %v33
  %v36 = vmul.f32 %v28, %v35
  %v37 = vld [vmem:[%s1] sm:$0x1]
  %v38 = vperm.slane %v37, 0
  %v39 = vmul.f32 %v36, %v38
  %v40 = vadd.f32 %v22, %v39
  %v41 = vld [vmem:[%s0 + $0x10] sm:$0xff]
  %v42 = vld [vmem:[%s0 + $0x18] sm:$0xff]
  %v43 = vadd.f32 %v41, %v42
  %44 = vadd.xlane.f32.xlu0 %v43
  %v45 = vpop.xlane.xlu0 %44
  %v46 = vmul.f32 %v45, %v35
  %v47 = vld [vmem:[%s1 + $0x1] sm:$0x1]
  %v48 = vperm.slane %v47, 0
  %v49 = vmul.f32 %v46, %v48
  %v50 = vadd.f32 %v40, %v49
  %v51 = vld [vmem:[%s0 + $0x20] sm:$0xff]
  %v52 = vld [vmem:[%s0 + $0x28] sm:$0xff]
  %v53 = vadd.f32 %v51, %v52
  %54 = vadd.xlane.f32.xlu0 %v53
  %v55 = vpop.xlane.xlu0 %54
  %v56 = vmul.f32 %v55, %v35
  %v57 = vld [vmem:[%s1 + $0x2] sm:$0x1]
  %v58 = vperm.slane %v57, 0
  %v59 = vmul.f32 %v56, %v58
  %v60 = vadd.f32 %v50, %v59
  %v61 = vmax.f32 %v60, 0.0
  %vm62 = vcmask 1043456
  %v63 = vsel %vm62, %v61, 0.0
  %v64 = vrot.slane %v63, 4
  %v65 = vadd.f32 %v63, %v64
  %v66 = vrot.slane %v65, 2
  %v67 = vadd.f32 %v65, %v66
  %v68 = vrot.slane %v67, 1
  %v69 = vadd.f32 %v67, %v68
  %v70 = vrcp.pop 4.0
  %v71 = vmul.f32 4.0, %v70
  %v72 = vsub.f32 1.0, %v71
  %v73 = vmul.f32 %v70, %v72
  %v74 = vadd.f32 %v70, %v73
  %vm75 = vweird.f32 %v70
  %v76 = vsel %vm75, %v70, %v74
  %v77 = vmul.f32 %v69, %v76
  %v79 = vrot.slane %v61, 4
  %v81 = vsel %vm62, %v79, 0.0
  %v82 = vrot.slane %v81, 4
  %v83 = vadd.f32 %v81, %v82
  %v84 = vrot.slane %v83, 2
  %v85 = vadd.f32 %v83, %v84
  %v86 = vrot.slane %v85, 1
  %v87 = vadd.f32 %v85, %v86
  %v88 = vmul.f32 %v87, %v76
  %vm89 = vcmask 1040384
  %v90 = vsel %vm89, %v77, %v88
  %vm91 = vcmask 1041408
  %v92 = vsel %vm91, %v90, 0.0
  %v93 = vpack.c.bf16 %v92, %v92
  %v94 = vld [vmem:[%s3] sm:$0xf]
  %v95 = vld [vmem:[%s3 + $0x4] sm:$0xf]
  %v96 = vld [vmem:[%s3 + $0x8] sm:$0xf]
  %v97 = vld [vmem:[%s3 + $0xc] sm:$0xf]
  %v98 = vld [vmem:[%s3 + $0x10] sm:$0xf]
  %v99 = vld [vmem:[%s3 + $0x14] sm:$0xf]
  %v100 = vld [vmem:[%s3 + $0x18] sm:$0xf]
  %v101 = vld [vmem:[%s3 + $0x1c] sm:$0xf]
  %v102 = vld [vmem:[%s3 + $0x20] sm:$0xf]
  %v103 = vld [vmem:[%s3 + $0x24] sm:$0xf]
  %v104 = vld [vmem:[%s3 + $0x28] sm:$0xf]
  %v105 = vld [vmem:[%s3 + $0x2c] sm:$0xf]
  %v106 = vld [vmem:[%s3 + $0x30] sm:$0xf]
  %v107 = vld [vmem:[%s3 + $0x34] sm:$0xf]
  %v108 = vld [vmem:[%s3 + $0x38] sm:$0xf]
  %v109 = vld [vmem:[%s3 + $0x3c] sm:$0xf]
  %v110 = vld [vmem:[%s4] sm:$0x1]
  %v112 = vperm.slane %v110, 0
  %v130 = vunpack.c.l.b16 %v94
  %v131 = vunpack.c.l.b16 %v95
  %v132 = vunpack.c.l.b16 %v96
  %v133 = vunpack.c.l.b16 %v97
  %v134 = vunpack.c.l.b16 %v98
  %v135 = vunpack.c.l.b16 %v99
  %v136 = vunpack.c.l.b16 %v100
  %v137 = vunpack.c.l.b16 %v101
  %v138 = vunpack.c.l.b16 %v102
  %v139 = vunpack.c.l.b16 %v103
  %v140 = vunpack.c.l.b16 %v104
  %v141 = vunpack.c.l.b16 %v105
  %v142 = vunpack.c.l.b16 %v106
  %v143 = vunpack.c.l.b16 %v107
  %v144 = vunpack.c.l.b16 %v108
  %v145 = vunpack.c.l.b16 %v109
  %v146 = vpack.c.b16 %v131, %v130
  %v147 = vpack.c.b16 %v133, %v132
  %v148 = vpack.c.b16 %v135, %v134
  %v149 = vpack.c.b16 %v137, %v136
  %v150 = vpack.c.b16 %v139, %v138
  %v151 = vpack.c.b16 %v141, %v140
  %v152 = vpack.c.b16 %v143, %v142
  %v153 = vpack.c.b16 %v145, %v144
  %162 = vmatpush.bf16.msra.mxu0 %v153
  %163 = vmatpush.bf16.msra.mxu0 %v152
  %164 = vmatpush.bf16.msra.mxu0 %v151
  %165 = vmatpush.bf16.msra.mxu0 %v150
  %166 = vmatpush.bf16.msra.mxu0 %v149
  %167 = vmatpush.bf16.msra.mxu0 %v148
  %168 = vmatpush.bf16.msra.mxu0 %v147
  %169 = vmatpush.bf16.msra.mxu0 %v146
  %170 = vmatmul.bf16.gmra.mxu0 %v93
  %v171 = vpop.f32.mrf.mxu0
  %v172 = vadd.f32 %v112, %v171
  %v173 = vpop.f32.mrf.mxu0
  %174 = vdwg.mxu0
  %175 = vst [vmem:[%s5] sm:$0xff] %v172
  // Predicated region
  $region22: #{forward.1} parent=0 // pred_check
    _
  $region23: #{forward.1} parent=0 // pred_check_branch
    %177 = sbr.rel (0) target = $region25
  $region24: #{forward.1} parent=0 // pred_region
    _
  $region25: #{forward.1} parent=0 // pred_fallthru
    _
  // Predicated region
  $region26: #{forward.1} parent=0 // pred_check
    _
  $region27: #{forward.1} parent=0 // pred_check_branch
    %179 = sbr.rel (0) target = $region29
  $region28: #{forward.1} parent=0 // pred_region
    _
  $region29: #{forward.1} parent=0 // pred_fallthru
    _

</llo_original>
